<compile_context>
chip_gen: v7x
topology: tpu7x:2x2x1
jax: 0.10.0
libtpu: 0.0.40
codegen_flags: <defaults>
</compile_context>

<pallas_src>
import jax
import jax.numpy as jnp
from jax.experimental import pallas as pl
from jax.experimental.pallas import tpu as pltpu

# ---- problem sizes (small, consistent with the module) ----
B = 2        # batch
L = 16       # d_audio_L  (encoder length / attention width)
H = 32       # d_audio_H  (hidden size)
D_OUT = 12   # vocabulary / output size
DEPTH = 2    # GRU layers

LANES = 128
assert 4 * H == LANES, "fused GRU gate width must fit one 128-lane MXU tile"


def _align8(n):
    return (n + 7) // 8 * 8


# --- row layout of the single packed parameter slab (all offsets 8-aligned) ---
GRU_W_OFF  = 0                                   # DEPTH blocks of (2H, 4H)
GRU_B_OFF  = GRU_W_OFF + DEPTH * 2 * H           # DEPTH rows of (4H,)
EMB_OFF    = _align8(GRU_B_OFF + DEPTH)          # D_OUT rows, cols [0:H]
COMB_W_OFF = _align8(EMB_OFF + D_OUT)            # 2H rows, cols [0:H]
COMB_B_OFF = _align8(COMB_W_OFF + 2 * H)         # 1 row,  cols [0:H]
OUT_W_OFF  = _align8(COMB_B_OFF + 1)             # H rows, cols [0:D_OUT]
OUT_B_OFF  = _align8(OUT_W_OFF + H)              # 1 row,  cols [0:D_OUT]
P_ROWS     = _align8(OUT_B_OFF + 1)              # total slab rows (264)

OUT_ROWS = 8                                     # output slab: rows 0:DEPTH*B hidden, next B rows logits


def pack_params(emb_w, comb_wa, comb_wb, comb_b, wih, whh, bih, bhh, out_w, out_b):
    """Pack all module parameters into one lane-dense (P_ROWS, 128) f32 slab (done once)."""
    p = jnp.zeros((P_ROWS, LANES), jnp.float32)
    for l in range(DEPTH):
        # fused gate weight: cols [0:H]=r, [H:2H]=z, [2H:3H]=ih_n, [3H:4H]=hh_n
        w = jnp.zeros((2 * H, 4 * H), jnp.float32)
        w = w.at[:H, 0 * H:1 * H].set(wih[l, 0]).at[H:, 0 * H:1 * H].set(whh[l, 0])
        w = w.at[:H, 1 * H:2 * H].set(wih[l, 1]).at[H:, 1 * H:2 * H].set(whh[l, 1])
        w = w.at[:H, 2 * H:3 * H].set(wih[l, 2])
        w = w.at[H:, 3 * H:4 * H].set(whh[l, 2])
        p = p.at[GRU_W_OFF + l * 2 * H: GRU_W_OFF + (l + 1) * 2 * H, :].set(w)
        bias = jnp.concatenate([bih[l, 0, 0] + bhh[l, 0, 0],
                                bih[l, 1, 0] + bhh[l, 1, 0],
                                bih[l, 2, 0],
                                bhh[l, 2, 0]], axis=0)            # (4H,)
        p = p.at[GRU_B_OFF + l, :].set(bias)
    p = p.at[EMB_OFF:EMB_OFF + D_OUT, :H].set(emb_w)
    p = p.at[COMB_W_OFF:COMB_W_OFF + H, :H].set(comb_wa)
    p = p.at[COMB_W_OFF + H:COMB_W_OFF + 2 * H, :H].set(comb_wb)
    p = p.at[COMB_B_OFF, :H].set(comb_b[0])
    p = p.at[OUT_W_OFF:OUT_W_OFF + H, :D_OUT].set(out_w)
    p = p.at[OUT_B_OFF, :D_OUT].set(out_b[0])
    return p


def gru_pipeline_kernel(ids_ref, hidden_ref, enc_ref, p_ref, out_ref):
    f32 = jnp.float32

    # --- embedding lookup: dynamic-row loads from the param slab (ids from SMEM) ---
    emb_rows = [p_ref[pl.ds(EMB_OFF + ids_ref[b], 1), :] for b in range(B)]   # (1,128) each
    inp_emb = jnp.concatenate(emb_rows, axis=0)[:, :H]                        # (B, H)

    # --- attention: softmax over the size-1 step dim == all-ones weights, so
    #     bmm(ones, out_encoder) is just a sum over L (XLU/VPU reduce, no MXU) ---
    attn_applied = jnp.sum(enc_ref[...], axis=1)                              # (B, H)

    # --- attn_combine: fused concat-Linear at full 128-lane width (cols H: are
    #     zero in the slab -> unmasked loads, one MXU push) + ReLU ---
    xh = jnp.concatenate([inp_emb, attn_applied], axis=1)                     # (B, 2H)
    comb_w = p_ref[COMB_W_OFF:COMB_W_OFF + 2 * H, :]                          # (2H, 128)
    comb_b = p_ref[COMB_B_OFF:COMB_B_OFF + 1, :]                              # (1, 128)
    x = jnp.maximum(jnp.dot(xh, comb_w, preferred_element_type=f32) + comb_b,
                    0.0)[:, :H]                                               # (B, H)

    # --- stacked unidirectional GRU, single time step: ONE fused matmul per layer ---
    new_h = []
    for l in range(DEPTH):
        h = hidden_ref[l]                                                     # (B, H)
        xh_l = jnp.concatenate([x, h], axis=1)                                # (B, 2H)
        w = p_ref[GRU_W_OFF + l * 2 * H: GRU_W_OFF + (l + 1) * 2 * H, :]      # (2H, 4H)
        b = p_ref[GRU_B_OFF + l: GRU_B_OFF + l + 1, :]                        # (1, 4H)
        g = jnp.dot(xh_l, w, preferred_element_type=f32) + b                  # (B, 4H)
        r = jax.nn.sigmoid(g[:, 0 * H:1 * H])
        z = jax.nn.sigmoid(g[:, 1 * H:2 * H])
        n = jnp.tanh(g[:, 2 * H:3 * H] + r * g[:, 3 * H:4 * H])
        h_new = (1.0 - z) * n + z * h
        new_h.append(h_new)
        x = h_new                                                             # feed next layer

    # --- output Linear at full 128-lane width (cols D_OUT: of weight/bias are 0) ---
    out_w = p_ref[OUT_W_OFF:OUT_W_OFF + H, :]                                 # (H, 128)
    out_b = p_ref[OUT_B_OFF:OUT_B_OFF + 1, :]                                 # (1, 128)
    logits = jnp.dot(x, out_w, preferred_element_type=f32) + out_b            # (B, 128)

    # --- assemble the (8,128) result slab in registers; one full unmasked store ---
    hcat = jnp.concatenate(new_h, axis=0)                                     # (DEPTH*B, H)
    h_rows = jnp.concatenate(
        [hcat, jnp.zeros((DEPTH * B, LANES - H), f32)], axis=1)               # (DEPTH*B, 128)
    pad_rows = jnp.zeros((OUT_ROWS - DEPTH * B - B, LANES), f32)              # fill to 8 rows
    out_ref[...] = jnp.concatenate([h_rows, logits, pad_rows], axis=0)        # (8, 128)


@jax.jit
def gru_pipeline(ids, hidden, enc, packed_params):
    """ids: (B,1) int32, hidden: (DEPTH,B,H) f32, enc: (B,L,H) f32, packed_params: (P_ROWS,128) f32."""
    slab = pl.pallas_call(
        gru_pipeline_kernel,
        out_shape=jax.ShapeDtypeStruct((OUT_ROWS, LANES), jnp.float32),
        in_specs=[pl.BlockSpec(memory_space=pltpu.MemorySpace.SMEM),   # ids
                  pl.BlockSpec(memory_space=pltpu.MemorySpace.VMEM),   # hidden
                  pl.BlockSpec(memory_space=pltpu.MemorySpace.VMEM),   # encoder
                  pl.BlockSpec(memory_space=pltpu.MemorySpace.VMEM)],  # packed params
        out_specs=pl.BlockSpec(memory_space=pltpu.MemorySpace.VMEM),
    )(ids[:, 0], hidden, enc, packed_params)
    new_hidden = slab[0:DEPTH * B, :H].reshape(DEPTH, B, H)
    logits = slab[DEPTH * B:DEPTH * B + B, :D_OUT]
    # torch: softmax over the size-1 seq dim -> identically ones, shape (B, 1, L)
    w_attn = jnp.ones((B, 1, L), jnp.float32)
    return logits, new_hidden, w_attn


def reference(ids, hidden, enc, emb_w, attn_wa, attn_wb, attn_b,
              comb_wa, comb_wb, comb_b, wih, whh, bih, bhh, out_w, out_b):
    inp_emb = emb_w[ids[:, 0]]                                    # (B, H)
    h_last = hidden[-1]
    attn_logits = inp_emb @ attn_wa + h_last @ attn_wb + attn_b
    w_attn = jax.nn.softmax(attn_logits[:, None, :], axis=1)      # (B, 1, L) -> ones
    attn_applied = jnp.einsum('bol,blh->boh', w_attn, enc)[:, 0, :]
    x = jax.nn.relu(inp_emb @ comb_wa + attn_applied @ comb_wb + comb_b)
    new_h = []
    for l in range(DEPTH):
        h = hidden[l]
        r = jax.nn.sigmoid(x @ wih[l, 0] + bih[l, 0] + h @ whh[l, 0] + bhh[l, 0])
        z = jax.nn.sigmoid(x @ wih[l, 1] + bih[l, 1] + h @ whh[l, 1] + bhh[l, 1])
        n = jnp.tanh(x @ wih[l, 2] + bih[l, 2] + r * (h @ whh[l, 2] + bhh[l, 2]))
        h_new = (1.0 - z) * n + z * h
        new_h.append(h_new)
        x = h_new
    logits = x @ out_w + out_b
    return logits, jnp.stack(new_h, axis=0), w_attn


if __name__ == "__main__":
    key = jax.random.PRNGKey(0)
    ks = jax.random.split(key, 16)

    def u(k, shape, fan_in):
        bound = 1.0 / (fan_in ** 0.5)
        return jax.random.uniform(k, shape, jnp.float32, -bound, bound)

    # Deterministic synthetic parameters (shapes follow the torch module; concat-Linears
    # are stored as two pre-transposed halves, GRU gates stacked as (DEPTH, 3, H, H)).
    emb_w   = jax.random.normal(ks[0], (D_OUT, H), jnp.float32)   # nn.Embedding(d_out, H)
    attn_wa = u(ks[1], (H, L), 2 * H)                             # attn: Linear(2H, L) (dead math)
    attn_wb = u(ks[2], (H, L), 2 * H)
    attn_b  = u(ks[3], (1, L), 2 * H)
    comb_wa = u(ks[4], (H, H), 2 * H)                             # attn_combine: Linear(2H, H)
    comb_wb = u(ks[5], (H, H), 2 * H)
    comb_b  = u(ks[6], (1, H), 2 * H)
    wih     = u(ks[7], (DEPTH, 3, H, H), H)                       # GRU weight_ih (transposed, per gate)
    whh     = u(ks[8], (DEPTH, 3, H, H), H)                       # GRU weight_hh
    bih     = u(ks[9], (DEPTH, 3, 1, H), H)
    bhh     = u(ks[10], (DEPTH, 3, 1, H), H)
    out_w   = u(ks[11], (H, D_OUT), H)                            # out: Linear(H, d_out)
    out_b   = u(ks[12], (1, D_OUT), H)

    # Example inputs.
    ids    = jax.random.randint(ks[13], (B, 1), 0, D_OUT, jnp.int32)
    hidden = jax.random.normal(ks[14], (DEPTH, B, H), jnp.float32)
    enc    = jax.random.normal(ks[15], (B, L, H), jnp.float32)

    packed = pack_params(emb_w, comb_wa, comb_wb, comb_b, wih, whh, bih, bhh, out_w, out_b)

    logits, new_hidden, w_attn = gru_pipeline(ids, hidden, enc, packed)
    jax.block_until_ready((logits, new_hidden, w_attn))

    ref_logits, ref_hidden, ref_w = reference(
        ids, hidden, enc, emb_w, attn_wa, attn_wb, attn_b,
        comb_wa, comb_wb, comb_b, wih, whh, bih, bhh, out_w, out_b)

    assert logits.shape == (B, D_OUT)
    assert new_hidden.shape == (DEPTH, B, H)
    assert w_attn.shape == (B, 1, L)
    assert jnp.allclose(logits, ref_logits, atol=2e-3, rtol=2e-3)
    assert jnp.allclose(new_hidden, ref_hidden, atol=2e-3, rtol=2e-3)
    assert jnp.allclose(w_attn, ref_w, atol=1e-6)

    print("KERNEL_OK")
</pallas_src>

<mosaic_0001>
module attributes {stable_mosaic.version = 11 : i64} {
  func.func @gru_pipeline_kernel(%arg0: memref<2xi32, #tpu.memory_space<smem>>, %arg1: memref<2x2x32xf32, #tpu.memory_space<vmem>>, %arg2: memref<2x16x32xf32, #tpu.memory_space<vmem>>, %arg3: memref<264x128xf32, #tpu.memory_space<vmem>>, %arg4: memref<8x128xf32, #tpu.memory_space<vmem>>) attributes {dimension_semantics = [], scalar_prefetch = 0 : i64, scratch_operands = 0 : i64, tpu.core_type = #tpu.core_type<tc>} {
    %c0 = arith.constant 0 : index
    %0 = memref.load %arg0[%c0] : memref<2xi32, #tpu.memory_space<smem>>
    %c136_i32 = arith.constant 136 : i32
    %1 = arith.addi %c136_i32, %0 : i32
    %2 = arith.index_cast %1 : i32 to index
    %c0_0 = arith.constant 0 : index
    %3 = vector.load %arg3[%2, %c0_0] : memref<264x128xf32, #tpu.memory_space<vmem>>, vector<1x128xf32>
    %c1 = arith.constant 1 : index
    %4 = memref.load %arg0[%c1] : memref<2xi32, #tpu.memory_space<smem>>
    %c136_i32_1 = arith.constant 136 : i32
    %5 = arith.addi %c136_i32_1, %4 : i32
    %6 = arith.index_cast %5 : i32 to index
    %c0_2 = arith.constant 0 : index
    %7 = vector.load %arg3[%6, %c0_2] : memref<264x128xf32, #tpu.memory_space<vmem>>, vector<1x128xf32>
    %8 = tpu.concatenate %3, %7 in 0 : vector<1x128xf32>, vector<1x128xf32> -> vector<2x128xf32>
    %9 = vector.extract_strided_slice %8 {offsets = [0, 0], sizes = [2, 32], strides = [1, 1]} : vector<2x128xf32> to vector<2x32xf32>
    %c0_3 = arith.constant 0 : index
    %c0_4 = arith.constant 0 : index
    %c0_5 = arith.constant 0 : index
    %10 = vector.load %arg2[%c0_3, %c0_4, %c0_5] : memref<2x16x32xf32, #tpu.memory_space<vmem>>, vector<2x16x32xf32>
    %cst = arith.constant dense<0.000000e+00> : vector<2x32xf32>
    %11 = vector.multi_reduction <add>, %10, %cst [1] : vector<2x16x32xf32> to vector<2x32xf32>
    %12 = tpu.concatenate %9, %11 in 1 : vector<2x32xf32>, vector<2x32xf32> -> vector<2x64xf32>
    %c152 = arith.constant 152 : index
    %c0_6 = arith.constant 0 : index
    %13 = vector.load %arg3[%c152, %c0_6] : memref<264x128xf32, #tpu.memory_space<vmem>>, vector<64x128xf32>
    %c216 = arith.constant 216 : index
    %c0_7 = arith.constant 0 : index
    %14 = vector.load %arg3[%c216, %c0_7] : memref<264x128xf32, #tpu.memory_space<vmem>>, vector<1x128xf32>
    %cst_8 = arith.constant dense<0.000000e+00> : vector<2x128xf32>
    %15 = tpu.matmul %12, %13, %cst_8 {dimension_numbers = #tpu.dot_dimension_numbers<[1], [0], [0], [1], [0, 0, 1, 1], [], []>} : vector<2x64xf32>, vector<64x128xf32>, vector<2x128xf32> -> vector<2x128xf32>
    %16 = vector.broadcast %14 : vector<1x128xf32> to vector<2x128xf32>
    %17 = arith.addf %15, %16 : vector<2x128xf32>
    %cst_9 = arith.constant 0.000000e+00 : f32
    %18 = vector.broadcast %cst_9 : f32 to vector<2x128xf32>
    %19 = arith.maximumf %17, %18 : vector<2x128xf32>
    %20 = vector.extract_strided_slice %19 {offsets = [0, 0], sizes = [2, 32], strides = [1, 1]} : vector<2x128xf32> to vector<2x32xf32>
    %c0_10 = arith.constant 0 : index
    %c0_11 = arith.constant 0 : index
    %c0_12 = arith.constant 0 : index
    %21 = vector.load %arg1[%c0_10, %c0_11, %c0_12] : memref<2x2x32xf32, #tpu.memory_space<vmem>>, vector<1x2x32xf32>
    %22 = vector.shape_cast %21 : vector<1x2x32xf32> to vector<2x32xf32>
    %23 = tpu.concatenate %20, %22 in 1 : vector<2x32xf32>, vector<2x32xf32> -> vector<2x64xf32>
    %c0_13 = arith.constant 0 : index
    %c0_14 = arith.constant 0 : index
    %24 = vector.load %arg3[%c0_13, %c0_14] : memref<264x128xf32, #tpu.memory_space<vmem>>, vector<64x128xf32>
    %c128 = arith.constant 128 : index
    %c0_15 = arith.constant 0 : index
    %25 = vector.load %arg3[%c128, %c0_15] : memref<264x128xf32, #tpu.memory_space<vmem>>, vector<1x128xf32>
    %cst_16 = arith.constant dense<0.000000e+00> : vector<2x128xf32>
    %26 = tpu.matmul %23, %24, %cst_16 {dimension_numbers = #tpu.dot_dimension_numbers<[1], [0], [0], [1], [0, 0, 1, 1], [], []>} : vector<2x64xf32>, vector<64x128xf32>, vector<2x128xf32> -> vector<2x128xf32>
    %27 = vector.broadcast %25 : vector<1x128xf32> to vector<2x128xf32>
    %28 = arith.addf %26, %27 : vector<2x128xf32>
    %29 = vector.extract_strided_slice %28 {offsets = [0, 0], sizes = [2, 32], strides = [1, 1]} : vector<2x128xf32> to vector<2x32xf32>
    %30 = arith.negf %29 : vector<2x32xf32>
    %31 = math.exp %30 : vector<2x32xf32>
    %cst_17 = arith.constant 1.000000e+00 : f32
    %32 = vector.broadcast %cst_17 : f32 to vector<2x32xf32>
    %33 = arith.addf %32, %31 : vector<2x32xf32>
    %34 = arith.divf %32, %33 : vector<2x32xf32>
    %35 = vector.extract_strided_slice %28 {offsets = [0, 32], sizes = [2, 32], strides = [1, 1]} : vector<2x128xf32> to vector<2x32xf32>
    %36 = arith.negf %35 : vector<2x32xf32>
    %37 = math.exp %36 : vector<2x32xf32>
    %cst_18 = arith.constant 1.000000e+00 : f32
    %38 = vector.broadcast %cst_18 : f32 to vector<2x32xf32>
    %39 = arith.addf %38, %37 : vector<2x32xf32>
    %40 = arith.divf %38, %39 : vector<2x32xf32>
    %41 = vector.extract_strided_slice %28 {offsets = [0, 64], sizes = [2, 32], strides = [1, 1]} : vector<2x128xf32> to vector<2x32xf32>
    %42 = vector.extract_strided_slice %28 {offsets = [0, 96], sizes = [2, 32], strides = [1, 1]} : vector<2x128xf32> to vector<2x32xf32>
    %43 = arith.mulf %34, %42 : vector<2x32xf32>
    %44 = arith.addf %41, %43 : vector<2x32xf32>
    %45 = math.tanh %44 : vector<2x32xf32>
    %cst_19 = arith.constant 1.000000e+00 : f32
    %46 = vector.broadcast %cst_19 : f32 to vector<2x32xf32>
    %47 = arith.subf %46, %40 : vector<2x32xf32>
    %48 = arith.mulf %47, %45 : vector<2x32xf32>
    %49 = arith.mulf %40, %22 : vector<2x32xf32>
    %50 = arith.addf %48, %49 : vector<2x32xf32>
    %c1_20 = arith.constant 1 : index
    %c0_21 = arith.constant 0 : index
    %c0_22 = arith.constant 0 : index
    %51 = vector.load %arg1[%c1_20, %c0_21, %c0_22] : memref<2x2x32xf32, #tpu.memory_space<vmem>>, vector<1x2x32xf32>
    %52 = vector.shape_cast %51 : vector<1x2x32xf32> to vector<2x32xf32>
    %53 = tpu.concatenate %50, %52 in 1 : vector<2x32xf32>, vector<2x32xf32> -> vector<2x64xf32>
    %c64 = arith.constant 64 : index
    %c0_23 = arith.constant 0 : index
    %54 = vector.load %arg3[%c64, %c0_23] : memref<264x128xf32, #tpu.memory_space<vmem>>, vector<64x128xf32>
    %c129 = arith.constant 129 : index
    %c0_24 = arith.constant 0 : index
    %55 = vector.load %arg3[%c129, %c0_24] : memref<264x128xf32, #tpu.memory_space<vmem>>, vector<1x128xf32>
    %cst_25 = arith.constant dense<0.000000e+00> : vector<2x128xf32>
    %56 = tpu.matmul %53, %54, %cst_25 {dimension_numbers = #tpu.dot_dimension_numbers<[1], [0], [0], [1], [0, 0, 1, 1], [], []>} : vector<2x64xf32>, vector<64x128xf32>, vector<2x128xf32> -> vector<2x128xf32>
    %57 = vector.broadcast %55 : vector<1x128xf32> to vector<2x128xf32>
    %58 = arith.addf %56, %57 : vector<2x128xf32>
    %59 = vector.extract_strided_slice %58 {offsets = [0, 0], sizes = [2, 32], strides = [1, 1]} : vector<2x128xf32> to vector<2x32xf32>
    %60 = arith.negf %59 : vector<2x32xf32>
    %61 = math.exp %60 : vector<2x32xf32>
    %cst_26 = arith.constant 1.000000e+00 : f32
    %62 = vector.broadcast %cst_26 : f32 to vector<2x32xf32>
    %63 = arith.addf %62, %61 : vector<2x32xf32>
    %64 = arith.divf %62, %63 : vector<2x32xf32>
    %65 = vector.extract_strided_slice %58 {offsets = [0, 32], sizes = [2, 32], strides = [1, 1]} : vector<2x128xf32> to vector<2x32xf32>
    %66 = arith.negf %65 : vector<2x32xf32>
    %67 = math.exp %66 : vector<2x32xf32>
    %cst_27 = arith.constant 1.000000e+00 : f32
    %68 = vector.broadcast %cst_27 : f32 to vector<2x32xf32>
    %69 = arith.addf %68, %67 : vector<2x32xf32>
    %70 = arith.divf %68, %69 : vector<2x32xf32>
    %71 = vector.extract_strided_slice %58 {offsets = [0, 64], sizes = [2, 32], strides = [1, 1]} : vector<2x128xf32> to vector<2x32xf32>
    %72 = vector.extract_strided_slice %58 {offsets = [0, 96], sizes = [2, 32], strides = [1, 1]} : vector<2x128xf32> to vector<2x32xf32>
    %73 = arith.mulf %64, %72 : vector<2x32xf32>
    %74 = arith.addf %71, %73 : vector<2x32xf32>
    %75 = math.tanh %74 : vector<2x32xf32>
    %cst_28 = arith.constant 1.000000e+00 : f32
    %76 = vector.broadcast %cst_28 : f32 to vector<2x32xf32>
    %77 = arith.subf %76, %70 : vector<2x32xf32>
    %78 = arith.mulf %77, %75 : vector<2x32xf32>
    %79 = arith.mulf %70, %52 : vector<2x32xf32>
    %80 = arith.addf %78, %79 : vector<2x32xf32>
    %c224 = arith.constant 224 : index
    %c0_29 = arith.constant 0 : index
    %81 = vector.load %arg3[%c224, %c0_29] : memref<264x128xf32, #tpu.memory_space<vmem>>, vector<32x128xf32>
    %c256 = arith.constant 256 : index
    %c0_30 = arith.constant 0 : index
    %82 = vector.load %arg3[%c256, %c0_30] : memref<264x128xf32, #tpu.memory_space<vmem>>, vector<1x128xf32>
    %cst_31 = arith.constant dense<0.000000e+00> : vector<2x128xf32>
    %83 = tpu.matmul %80, %81, %cst_31 {dimension_numbers = #tpu.dot_dimension_numbers<[1], [0], [0], [1], [0, 0, 1, 1], [], []>} : vector<2x32xf32>, vector<32x128xf32>, vector<2x128xf32> -> vector<2x128xf32>
    %84 = vector.broadcast %82 : vector<1x128xf32> to vector<2x128xf32>
    %85 = arith.addf %83, %84 : vector<2x128xf32>
    %86 = tpu.concatenate %50, %80 in 0 : vector<2x32xf32>, vector<2x32xf32> -> vector<4x32xf32>
    %cst_32 = arith.constant 0.000000e+00 : f32
    %87 = vector.broadcast %cst_32 : f32 to vector<4x96xf32>
    %88 = tpu.concatenate %86, %87 in 1 : vector<4x32xf32>, vector<4x96xf32> -> vector<4x128xf32>
    %cst_33 = arith.constant 0.000000e+00 : f32
    %89 = vector.broadcast %cst_33 : f32 to vector<2x128xf32>
    %90 = tpu.concatenate %88, %85, %89 in 0 : vector<4x128xf32>, vector<2x128xf32>, vector<2x128xf32> -> vector<8x128xf32>
    %c0_34 = arith.constant 0 : index
    %c0_35 = arith.constant 0 : index
    %91 = vector.load %arg4[%c0_34, %c0_35] : memref<8x128xf32, #tpu.memory_space<vmem>>, vector<8x128xf32>
    tpu.vector_store %arg4[%c0_34, %c0_35], %90 {strides = array<i32>} : memref<8x128xf32, #tpu.memory_space<vmem>>, vector<8x128xf32>,
    return
  }
}

</mosaic_0001>

<llo_original>
// kernel: gru_pipeline.1
$region0: #{gru_pipeline.1}
  #allocation0 [shape = 'u32[]', space=smem, size = 0x4, offset = 0x4, fixed_abs, tag = 'smem constant byte address 0x4 - core index']
  #allocation1 [shape = 'u32[144,128]{1,0:T(1,128)}', space=vmem, size = 0x12000, scoped, tag = 'internal scratch']
  %s0 = inlined_call_operand.vmem [shape: s32[2], index: 0, kind: input, shape index: {}]
  %s1 = inlined_call_operand.vmem [shape: f32[2,2,32], index: 1, kind: input, shape index: {}]
  %s2 = inlined_call_operand.hbm [shape: f32[2,16,32], index: 2, kind: input, shape index: {}]
  %s3 = inlined_call_operand.hbm [shape: f32[264,128], index: 3, kind: input, shape index: {}]
  %s4 = inlined_call_operand.vmem [shape: f32[8,128], index: 4, kind: output, shape index: {}]
  %s5 = sld [smem:[#allocation0]]
  $region38: #{gru_pipeline.1} parent=0
    _
  %s7 = ssub.s32 1, %s5
  %s8 = scalar_select 0, %s7, %s5
  $region1: #{gru_pipeline.1} parent=0
    #allocation2 [shape = 'u8[512]{0}', space=smem, size = 0x200, scoped, tag = 'input window, operand 0, single buffered']
    #allocation3 [shape = 's32[1]{0}', space=sflag, size = 0x4, scoped, tag = 'scoped memory for gru_pipeline.1']
    #allocation4 [shape = 's32[1]{0}', space=sflag, size = 0x4, scoped, tag = 'scoped memory for gru_pipeline.1']
    #allocation5 [shape = 'u8[16384]{0}', space=vmem, size = 0x4000, scoped, tag = 'input window, operand 2, single buffered']
    #allocation6 [shape = 'u8[135168]{0}', space=vmem, size = 0x21000, scoped, tag = 'input window, operand 3, single buffered']
    #allocation7 [shape = 's32[1]{0}', space=sflag, size = 0x4, scoped, tag = 'scoped memory for gru_pipeline.1']
    %9 = vsyncpa [#allocation4], 0
    %10 = vsyncpa [#allocation3], 0
    %11 = vsyncpa [#allocation7], 0
    // Predicated region
    $region2: #{gru_pipeline.1} parent=1 // pred_check
      _
    $region3: #{gru_pipeline.1} parent=1 // pred_check_branch
      %13 = sbr.rel (0) target = $region5
    $region4: #{gru_pipeline.1} parent=1 // pred_region
      %s15 = ssub.s32 16, 16
      %16 = vsyncadd [#allocation4], %s15
      %s18 = sshll.u32 %s0, 4
      %s19 = int_to_ptr.vmem [resolvable:$true] %s18
      %21 = dma.vmem_to_smem %s19, 16, [#allocation2], [#allocation4]
    $region5: #{gru_pipeline.1} parent=1 // pred_fallthru
      _
    // Predicated region
    $region6: #{gru_pipeline.1} parent=1 // pred_check
      _
    $region7: #{gru_pipeline.1} parent=1 // pred_check_branch
      %23 = sbr.rel (0) target = $region9
    $region8: #{gru_pipeline.1} parent=1 // pred_region
      _
    $region9: #{gru_pipeline.1} parent=1 // pred_fallthru
      _
    // Predicated region
    $region10: #{gru_pipeline.1} parent=1 // pred_check
      _
    $region11: #{gru_pipeline.1} parent=1 // pred_check_branch
      %25 = sbr.rel (0) target = $region13
    $region12: #{gru_pipeline.1} parent=1 // pred_region
      %s27 = ssub.s32 512, 512
      %28 = vsyncadd [#allocation3], %s27
      %s29 = sshll.u32 [#allocation5], 4
      %s30 = int_to_ptr.vmem [resolvable:$true] %s29
      %35 = dma.hbm_to_vmem [thread:$0]  %s2, 512, %s30, [#allocation3], 128, 128, 8
    $region13: #{gru_pipeline.1} parent=1 // pred_fallthru
      _
    // Predicated region
    $region14: #{gru_pipeline.1} parent=1 // pred_check
      _
    $region15: #{gru_pipeline.1} parent=1 // pred_check_branch
      %37 = sbr.rel (0) target = $region17
    $region16: #{gru_pipeline.1} parent=1 // pred_region
      %s39 = ssub.s32 4224, 4224
      %40 = vsyncadd [#allocation7], %s39
      %s41 = sshll.u32 [#allocation6], 4
      %s42 = int_to_ptr.vmem [resolvable:$true] %s41
      %47 = dma.hbm_to_vmem [thread:$0]  %s3, 4224, %s42, [#allocation7], 128, 128, 8
    $region17: #{gru_pipeline.1} parent=1 // pred_fallthru
      _
    // Predicated region
    $region18: #{gru_pipeline.1} parent=1 // pred_check
      _
    $region19: #{gru_pipeline.1} parent=1 // pred_check_branch
      %49 = sbr.rel (0) target = $region21
    $region20: #{gru_pipeline.1} parent=1 // pred_region
      %50 = dma.done [#allocation4], 16
    $region21: #{gru_pipeline.1} parent=1 // pred_fallthru
      _
    // Predicated region
    $region22: #{gru_pipeline.1} parent=1 // pred_check
      _
    $region23: #{gru_pipeline.1} parent=1 // pred_check_branch
      %52 = sbr.rel (0) target = $region25
    $region24: #{gru_pipeline.1} parent=1 // pred_region
      %53 = dma.done [#allocation3], 512
    $region25: #{gru_pipeline.1} parent=1 // pred_fallthru
      _
    // Predicated region
    $region26: #{gru_pipeline.1} parent=1 // pred_check
      _
    $region27: #{gru_pipeline.1} parent=1 // pred_check_branch
      %55 = sbr.rel (0) target = $region29
    $region28: #{gru_pipeline.1} parent=1 // pred_region
      %56 = dma.done [#allocation7], 4224
    $region29: #{gru_pipeline.1} parent=1 // pred_fallthru
      _
    %57 = sfence
    %s58 = sld [smem:[#allocation2]]
    %s59 = sadd.s32 %s58, 136
    %s60 = scalar_lea.vmem [#allocation6], %s59
    %v61 = vld [vmem:[%s60] sm:$0x1]
    %s62 = sld [smem:[#allocation2 + $0x1]]
    %s63 = sadd.s32 %s62, 136
    %s64 = scalar_lea.vmem [#allocation6], %s63
    %v65 = vld [vmem:[%s64] sm:$0x1]
    %v67 = vrot.slane %v65, 7
    %vm69 = vcmask 1040384
    %v70 = vsel %vm69, %v61, %v67
    %v71 = vld [vmem:[#allocation5] sm:$0xff]
    %v72 = vld [vmem:[#allocation5 + $0x8] sm:$0xff]
    %v73 = vld [vmem:[#allocation5 + $0x10] sm:$0xff]
    %v74 = vld [vmem:[#allocation5 + $0x18] sm:$0xff]
    %vm75 = vcmask 261120
    %v76 = vsel %vm75, %v71, 0.0
    %v77 = vsel %vm75, %v72, 0.0
    %v78 = vadd.f32 %v76, %v77
    %v79 = vrot.slane %v78, 4
    %v80 = vadd.f32 %v78, %v79
    %v81 = vrot.slane %v80, 2
    %v82 = vadd.f32 %v80, %v81
    %v83 = vrot.slane %v82, 1
    %v84 = vadd.f32 %v82, %v83
    %v85 = vsel %vm75, %v73, 0.0
    %v86 = vsel %vm75, %v74, 0.0
    %v87 = vadd.f32 %v85, %v86
    %v88 = vrot.slane %v87, 4
    %v89 = vadd.f32 %v87, %v88
    %v90 = vrot.slane %v89, 2
    %v91 = vadd.f32 %v89, %v90
    %v92 = vrot.slane %v91, 1
    %v93 = vadd.f32 %v91, %v92
    %vm96 = vcmask 1041409
    %v97 = vsel %vm96, %v93, %v84
    %98 = vrot.lane.b32.xlu0 %v97, 32
    %v99 = vpop.permute.xlu0 %98
    %v101 = vsel %vm75, %v70, %v99
    %v102 = vld [vmem:[#allocation6 + $0x98] sm:$0xff]
    %v103 = vld [vmem:[#allocation6 + $0xa0] sm:$0xff]
    %v104 = vld [vmem:[#allocation6 + $0xa8] sm:$0xff]
    %v105 = vld [vmem:[#allocation6 + $0xb0] sm:$0xff]
    %v106 = vld [vmem:[#allocation6 + $0xb8] sm:$0xff]
    %v107 = vld [vmem:[#allocation6 + $0xc0] sm:$0xff]
    %v108 = vld [vmem:[#allocation6 + $0xc8] sm:$0xff]
    %v109 = vld [vmem:[#allocation6 + $0xd0] sm:$0xff]
    %v110 = vld [vmem:[#allocation6 + $0xd8] sm:$0x1]
    %v111 = vlaneseq
    %v112 = vshrl.u32 %v111, 7
    %v113 = vsub.s32 0, %v112
    %v114 = vrot.slane %v110, %v113
    %vm115 = vcmask 523264
    %v117 = vsel %vm115, %v101, 0
    %119 = vmatprep.subr.mxu0 0.0
    %120 = vmatpush1.msra.mxu0 %v102
    %121 = vmatprep.subr.mxu0 0.0
    %122 = vmatpush1.msra.mxu0 %v103
    %123 = vmatprep.subr.mxu0 0.0
    %124 = vmatpush1.msra.mxu0 %v104
    %125 = vmatprep.subr.mxu0 0.0
    %126 = vmatpush1.msra.mxu0 %v105
    %127 = vmatprep.subr.mxu0 0.0
    %128 = vmatpush1.msra.mxu0 %v106
    %129 = vmatprep.subr.mxu0 0.0
    %130 = vmatpush1.msra.mxu0 %v107
    %131 = vmatprep.subr.mxu0 0.0
    %132 = vmatpush1.msra.mxu0 %v108
    %133 = vmatprep.subr.mxu0 0.0
    %134 = vmatpush1.msra.mxu0 %v109
    %135 = vmatprep.subr.mxu0 0.0
    %136 = vmatpush1.msra.mxu0 0.0
    %137 = vmatprep.subr.mxu0 0.0
    %138 = vmatpush1.msra.mxu0 0.0
    %139 = vmatprep.subr.mxu0 0.0
    %140 = vmatpush1.msra.mxu0 0.0
    %141 = vmatprep.subr.mxu0 0.0
    %142 = vmatpush1.msra.mxu0 0.0
    %143 = vmatprep.subr.mxu0 0.0
    %144 = vmatpush1.msra.mxu0 0.0
    %145 = vmatprep.subr.mxu0 0.0
    %146 = vmatpush1.msra.mxu0 0.0
    %147 = vmatprep.subr.mxu0 0.0
    %148 = vmatpush1.msra.mxu0 0.0
    %149 = vmatprep.subr.mxu0 0.0
    %150 = vmatpush1.msra.mxu0 0.0
    %151 = vmatprep.subr.mxu0 0.0
    %152 = vmatpush1.msra.mxu0 0.0
    %153 = vmatprep.subr.mxu0 0.0
    %154 = vmatpush1.msra.mxu0 0.0
    %155 = vmatprep.subr.mxu0 0.0
    %156 = vmatpush1.msra.mxu0 0.0
    %157 = vmatprep.subr.mxu0 0.0
    %158 = vmatpush1.msra.mxu0 0.0
    %159 = vmatprep.subr.mxu0 0.0
    %160 = vmatpush1.msra.mxu0 0.0
    %161 = vmatprep.subr.mxu0 0.0
    %162 = vmatpush1.msra.mxu0 0.0
    %163 = vmatprep.subr.mxu0 0.0
    %164 = vmatpush1.msra.mxu0 0.0
    %165 = vmatprep.subr.mxu0 0.0
    %166 = vmatpush1.msra.mxu0 0.0
    %167 = vmatprep.subr.mxu0 0.0
    %168 = vmatpush1.msra.mxu0 0.0
    %169 = vmatprep.subr.mxu0 0.0
    %170 = vmatpush1.msra.mxu0 0.0
    %171 = vmatprep.subr.mxu0 0.0
    %172 = vmatpush1.msra.mxu0 0.0
    %173 = vmatprep.subr.mxu0 0.0
    %174 = vmatpush1.msra.mxu0 0.0
    %175 = vmatprep.subr.mxu0 0.0
    %176 = vmatpush1.msra.mxu0 0.0
    %177 = vmatprep.subr.mxu0 0.0
    %178 = vmatpush1.msra.mxu0 0.0
    %179 = vmatprep.subr.mxu0 0.0
    %180 = vmatpush1.msra.mxu0 0.0
    %181 = vmatprep.subr.mxu0 0.0
    %182 = vmatpush1.msra.mxu0 0.0
    %183 = vmatprep.mubr.f32.mxu0 0.0
    %184 = vmatmul.mubr.f32.gmra.mrb[0].mxu0 %v117
    %v185 = vpop.f32.mrb[0].mxu0
    %v186 = vadd.f32 %v114, %v185
    %v187 = vpop.f32.mrb[0].mxu0
    %188 = vdwg.mxu0
    %v189 = vmax.f32 %v186, 0.0
    %v190 = vld [vmem:[%s1] sm:$0x3]
    %192 = vrot.lane.b32.xlu0 %v190, 32
    %v193 = vpop.permute.xlu0 %192
    %v195 = vsel %vm75, %v189, %v193
    %v196 = vld [vmem:[#allocation6] sm:$0xff]
    %v197 = vld [vmem:[#allocation6 + $0x8] sm:$0xff]
    %v198 = vld [vmem:[#allocation6 + $0x10] sm:$0xff]
    %v199 = vld [vmem:[#allocation6 + $0x18] sm:$0xff]
    %v200 = vld [vmem:[#allocation6 + $0x20] sm:$0xff]
    %v201 = vld [vmem:[#allocation6 + $0x28] sm:$0xff]
    %v202 = vld [vmem:[#allocation6 + $0x30] sm:$0xff]
    %v203 = vld [vmem:[#allocation6 + $0x38] sm:$0xff]
    %v204 = vld [vmem:[#allocation6 + $0x80] sm:$0x1]
    %v205 = vlaneseq
    %v206 = vshrl.u32 %v205, 7
    %v207 = vsub.s32 0, %v206
    %v208 = vrot.slane %v204, %v207
    %v210 = vsel %vm115, %v195, 0
    %212 = vmatprep.subr.mxu0 0.0
    %213 = vmatpush1.msra.mxu0 %v196
    %214 = vmatprep.subr.mxu0 0.0
    %215 = vmatpush1.msra.mxu0 %v197
    %216 = vmatprep.subr.mxu0 0.0
    %217 = vmatpush1.msra.mxu0 %v198
    %218 = vmatprep.subr.mxu0 0.0
    %219 = vmatpush1.msra.mxu0 %v199
    %220 = vmatprep.subr.mxu0 0.0
    %221 = vmatpush1.msra.mxu0 %v200
    %222 = vmatprep.subr.mxu0 0.0
    %223 = vmatpush1.msra.mxu0 %v201
    %224 = vmatprep.subr.mxu0 0.0
    %225 = vmatpush1.msra.mxu0 %v202
    %226 = vmatprep.subr.mxu0 0.0
    %227 = vmatpush1.msra.mxu0 %v203
    %228 = vmatprep.subr.mxu0 0.0
    %229 = vmatpush1.msra.mxu0 0.0
    %230 = vmatprep.subr.mxu0 0.0
    %231 = vmatpush1.msra.mxu0 0.0
    %232 = vmatprep.subr.mxu0 0.0
    %233 = vmatpush1.msra.mxu0 0.0
    %234 = vmatprep.subr.mxu0 0.0
    %235 = vmatpush1.msra.mxu0 0.0
    %236 = vmatprep.subr.mxu0 0.0
    %237 = vmatpush1.msra.mxu0 0.0
    %238 = vmatprep.subr.mxu0 0.0
    %239 = vmatpush1.msra.mxu0 0.0
    %240 = vmatprep.subr.mxu0 0.0
    %241 = vmatpush1.msra.mxu0 0.0
    %242 = vmatprep.subr.mxu0 0.0
    %243 = vmatpush1.msra.mxu0 0.0
    %244 = vmatprep.subr.mxu0 0.0
    %245 = vmatpush1.msra.mxu0 0.0
    %246 = vmatprep.subr.mxu0 0.0
    %247 = vmatpush1.msra.mxu0 0.0
    %248 = vmatprep.subr.mxu0 0.0
    %249 = vmatpush1.msra.mxu0 0.0
    %250 = vmatprep.subr.mxu0 0.0
    %251 = vmatpush1.msra.mxu0 0.0
    %252 = vmatprep.subr.mxu0 0.0
    %253 = vmatpush1.msra.mxu0 0.0
    %254 = vmatprep.subr.mxu0 0.0
    %255 = vmatpush1.msra.mxu0 0.0
    %256 = vmatprep.subr.mxu0 0.0
    %257 = vmatpush1.msra.mxu0 0.0
    %258 = vmatprep.subr.mxu0 0.0
    %259 = vmatpush1.msra.mxu0 0.0
    %260 = vmatprep.subr.mxu0 0.0
    %261 = vmatpush1.msra.mxu0 0.0
    %262 = vmatprep.subr.mxu0 0.0
    %263 = vmatpush1.msra.mxu0 0.0
    %264 = vmatprep.subr.mxu0 0.0
    %265 = vmatpush1.msra.mxu0 0.0
    %266 = vmatprep.subr.mxu0 0.0
    %267 = vmatpush1.msra.mxu0 0.0
    %268 = vmatprep.subr.mxu0 0.0
    %269 = vmatpush1.msra.mxu0 0.0
    %270 = vmatprep.subr.mxu0 0.0
    %271 = vmatpush1.msra.mxu0 0.0
    %272 = vmatprep.subr.mxu0 0.0
    %273 = vmatpush1.msra.mxu0 0.0
    %274 = vmatprep.subr.mxu0 0.0
    %275 = vmatpush1.msra.mxu0 0.0
    %276 = vmatprep.mubr.f32.mxu0 0.0
    %277 = vmatmul.mubr.f32.gmra.mrb[0].mxu0 %v210
    %v278 = vpop.f32.mrb[0].mxu0
    %v279 = vadd.f32 %v208, %v278
    %v280 = vpop.f32.mrb[0].mxu0
    %281 = vdwg.mxu0
    %v282 = vxor.u32 %v279, 2147483648
    %v283 = vmul.f32 %v282, 1.442695
    %v284 = vpow.pop %v283
    %v285 = vadd.f32 %v284, 1.0
    %v286 = vrcp.pop %v285
    %v287 = vmul.f32 1.0, %v286
    %289 = vrot.lane.b32.xlu0 %v279, 32
    %v290 = vpop.permute.xlu0 %289
    %v292 = vmul.f32 %v287, %v290
    %294 = vrot.lane.b32.xlu0 %v292, 64
    %v295 = vpop.permute.xlu0 %294
    %v297 = vadd.f32 %v279, %v295
    %v298 = vtanh.pop %v297
    %v299 = vsub.f32 1.0, %v287
    %301 = vrot.lane.b32.xlu0 %v298, 96
    %v302 = vpop.permute.xlu0 %301
    %v304 = vmul.f32 %v299, %v302
    %v305 = vmul.f32 %v287, %v193
    %v306 = vadd.f32 %v304, %v305
    %s307 = scalar_lea.vmem %s1, 2
    %v308 = vld [vmem:[%s307] sm:$0x3]
    %310 = vrot.lane.b32.xlu0 %v306, 96
    %v311 = vpop.permute.xlu0 %310
    %314 = vrot.lane.b32.xlu0 %v308, 32
    %v315 = vpop.permute.xlu0 %314
    %v317 = vsel %vm75, %v311, %v315
    %v318 = vld [vmem:[#allocation6 + $0x40] sm:$0xff]
    %v319 = vld [vmem:[#allocation6 + $0x48] sm:$0xff]
    %v320 = vld [vmem:[#allocation6 + $0x50] sm:$0xff]
    %v321 = vld [vmem:[#allocation6 + $0x58] sm:$0xff]
    %v322 = vld [vmem:[#allocation6 + $0x60] sm:$0xff]
    %v323 = vld [vmem:[#allocation6 + $0x68] sm:$0xff]
    %v324 = vld [vmem:[#allocation6 + $0x70] sm:$0xff]
    %v325 = vld [vmem:[#allocation6 + $0x78] sm:$0xff]
    %v326 = vld [vmem:[#allocation6 + $0x81] sm:$0x1]
    %v327 = vlaneseq
    %v328 = vshrl.u32 %v327, 7
    %v329 = vsub.s32 0, %v328
    %v330 = vrot.slane %v326, %v329
    %v332 = vsel %vm115, %v317, 0
    %334 = vmatprep.subr.mxu0 0.0
    %335 = vmatpush1.msra.mxu0 %v318
    %336 = vmatprep.subr.mxu0 0.0
    %337 = vmatpush1.msra.mxu0 %v319
    %338 = vmatprep.subr.mxu0 0.0
    %339 = vmatpush1.msra.mxu0 %v320
    %340 = vmatprep.subr.mxu0 0.0
    %341 = vmatpush1.msra.mxu0 %v321
    %342 = vmatprep.subr.mxu0 0.0
    %343 = vmatpush1.msra.mxu0 %v322
    %344 = vmatprep.subr.mxu0 0.0
    %345 = vmatpush1.msra.mxu0 %v323
    %346 = vmatprep.subr.mxu0 0.0
    %347 = vmatpush1.msra.mxu0 %v324
    %348 = vmatprep.subr.mxu0 0.0
    %349 = vmatpush1.msra.mxu0 %v325
    %350 = vmatprep.subr.mxu0 0.0
    %351 = vmatpush1.msra.mxu0 0.0
    %352 = vmatprep.subr.mxu0 0.0
    %353 = vmatpush1.msra.mxu0 0.0
    %354 = vmatprep.subr.mxu0 0.0
    %355 = vmatpush1.msra.mxu0 0.0
    %356 = vmatprep.subr.mxu0 0.0
    %357 = vmatpush1.msra.mxu0 0.0
    %358 = vmatprep.subr.mxu0 0.0
    %359 = vmatpush1.msra.mxu0 0.0
    %360 = vmatprep.subr.mxu0 0.0
    %361 = vmatpush1.msra.mxu0 0.0
    %362 = vmatprep.subr.mxu0 0.0
    %363 = vmatpush1.msra.mxu0 0.0
    %364 = vmatprep.subr.mxu0 0.0
    %365 = vmatpush1.msra.mxu0 0.0
    %366 = vmatprep.subr.mxu0 0.0
    %367 = vmatpush1.msra.mxu0 0.0
    %368 = vmatprep.subr.mxu0 0.0
    %369 = vmatpush1.msra.mxu0 0.0
    %370 = vmatprep.subr.mxu0 0.0
    %371 = vmatpush1.msra.mxu0 0.0
    %372 = vmatprep.subr.mxu0 0.0
    %373 = vmatpush1.msra.mxu0 0.0
    %374 = vmatprep.subr.mxu0 0.0
    %375 = vmatpush1.msra.mxu0 0.0
    %376 = vmatprep.subr.mxu0 0.0
    %377 = vmatpush1.msra.mxu0 0.0
    %378 = vmatprep.subr.mxu0 0.0
    %379 = vmatpush1.msra.mxu0 0.0
    %380 = vmatprep.subr.mxu0 0.0
    %381 = vmatpush1.msra.mxu0 0.0
    %382 = vmatprep.subr.mxu0 0.0
    %383 = vmatpush1.msra.mxu0 0.0
    %384 = vmatprep.subr.mxu0 0.0
    %385 = vmatpush1.msra.mxu0 0.0
    %386 = vmatprep.subr.mxu0 0.0
    %387 = vmatpush1.msra.mxu0 0.0
    %388 = vmatprep.subr.mxu0 0.0
    %389 = vmatpush1.msra.mxu0 0.0
    %390 = vmatprep.subr.mxu0 0.0
    %391 = vmatpush1.msra.mxu0 0.0
    %392 = vmatprep.subr.mxu0 0.0
    %393 = vmatpush1.msra.mxu0 0.0
    %394 = vmatprep.subr.mxu0 0.0
    %395 = vmatpush1.msra.mxu0 0.0
    %396 = vmatprep.subr.mxu0 0.0
    %397 = vmatpush1.msra.mxu0 0.0
    %398 = vmatprep.mubr.f32.mxu0 0.0
    %399 = vmatmul.mubr.f32.gmra.mrb[0].mxu0 %v332
    %v400 = vpop.f32.mrb[0].mxu0
    %v401 = vadd.f32 %v330, %v400
    %v402 = vpop.f32.mrb[0].mxu0
    %403 = vdwg.mxu0
    %v404 = vxor.u32 %v401, 2147483648
    %v405 = vmul.f32 %v404, 1.442695
    %v406 = vpow.pop %v405
    %v407 = vadd.f32 %v406, 1.0
    %v408 = vrcp.pop %v407
    %v409 = vmul.f32 1.0, %v408
    %411 = vrot.lane.b32.xlu0 %v401, 32
    %v412 = vpop.permute.xlu0 %411
    %v414 = vmul.f32 %v409, %v412
    %416 = vrot.lane.b32.xlu0 %v414, 64
    %v417 = vpop.permute.xlu0 %416
    %v419 = vadd.f32 %v401, %v417
    %v420 = vtanh.pop %v419
    %v421 = vsub.f32 1.0, %v409
    %423 = vrot.lane.b32.xlu0 %v420, 96
    %v424 = vpop.permute.xlu0 %423
    %v426 = vmul.f32 %v421, %v424
    %v427 = vmul.f32 %v409, %v315
    %v428 = vadd.f32 %v426, %v427
    %v429 = vld [vmem:[#allocation6 + $0xe0] sm:$0xff]
    %v430 = vld [vmem:[#allocation6 + $0xe8] sm:$0xff]
    %v431 = vld [vmem:[#allocation6 + $0xf0] sm:$0xff]
    %v432 = vld [vmem:[#allocation6 + $0xf8] sm:$0xff]
    %v433 = vld [vmem:[#allocation6 + $0x100] sm:$0x1]
    %v434 = vlaneseq
    %v435 = vshrl.u32 %v434, 7
    %v436 = vsub.s32 0, %v435
    %v437 = vrot.slane %v433, %v436
    %439 = vrot.lane.b32.xlu0 %v428, 96
    %v440 = vpop.permute.xlu0 %439
    %v441 = vsel %vm75, %v440, 0
    %443 = vmatprep.subr.mxu0 0.0
    %444 = vmatpush1.msra.mxu0 %v429
    %445 = vmatprep.subr.mxu0 0.0
    %446 = vmatpush1.msra.mxu0 %v430
    %447 = vmatprep.subr.mxu0 0.0
    %448 = vmatpush1.msra.mxu0 %v431
    %449 = vmatprep.subr.mxu0 0.0
    %450 = vmatpush1.msra.mxu0 %v432
    %451 = vmatprep.subr.mxu0 0.0
    %452 = vmatpush1.msra.mxu0 0.0
    %453 = vmatprep.subr.mxu0 0.0
    %454 = vmatpush1.msra.mxu0 0.0
    %455 = vmatprep.subr.mxu0 0.0
    %456 = vmatpush1.msra.mxu0 0.0
    %457 = vmatprep.subr.mxu0 0.0
    %458 = vmatpush1.msra.mxu0 0.0
    %459 = vmatprep.subr.mxu0 0.0
    %460 = vmatpush1.msra.mxu0 0.0
    %461 = vmatprep.subr.mxu0 0.0
    %462 = vmatpush1.msra.mxu0 0.0
    %463 = vmatprep.subr.mxu0 0.0
    %464 = vmatpush1.msra.mxu0 0.0
    %465 = vmatprep.subr.mxu0 0.0
    %466 = vmatpush1.msra.mxu0 0.0
    %467 = vmatprep.subr.mxu0 0.0
    %468 = vmatpush1.msra.mxu0 0.0
    %469 = vmatprep.subr.mxu0 0.0
    %470 = vmatpush1.msra.mxu0 0.0
    %471 = vmatprep.subr.mxu0 0.0
    %472 = vmatpush1.msra.mxu0 0.0
    %473 = vmatprep.subr.mxu0 0.0
    %474 = vmatpush1.msra.mxu0 0.0
    %475 = vmatprep.subr.mxu0 0.0
    %476 = vmatpush1.msra.mxu0 0.0
    %477 = vmatprep.subr.mxu0 0.0
    %478 = vmatpush1.msra.mxu0 0.0
    %479 = vmatprep.subr.mxu0 0.0
    %480 = vmatpush1.msra.mxu0 0.0
    %481 = vmatprep.subr.mxu0 0.0
    %482 = vmatpush1.msra.mxu0 0.0
    %483 = vmatprep.subr.mxu0 0.0
    %484 = vmatpush1.msra.mxu0 0.0
    %485 = vmatprep.subr.mxu0 0.0
    %486 = vmatpush1.msra.mxu0 0.0
    %487 = vmatprep.subr.mxu0 0.0
    %488 = vmatpush1.msra.mxu0 0.0
    %489 = vmatprep.subr.mxu0 0.0
    %490 = vmatpush1.msra.mxu0 0.0
    %491 = vmatprep.subr.mxu0 0.0
    %492 = vmatpush1.msra.mxu0 0.0
    %493 = vmatprep.subr.mxu0 0.0
    %494 = vmatpush1.msra.mxu0 0.0
    %495 = vmatprep.subr.mxu0 0.0
    %496 = vmatpush1.msra.mxu0 0.0
    %497 = vmatprep.subr.mxu0 0.0
    %498 = vmatpush1.msra.mxu0 0.0
    %499 = vmatprep.subr.mxu0 0.0
    %500 = vmatpush1.msra.mxu0 0.0
    %501 = vmatprep.subr.mxu0 0.0
    %502 = vmatpush1.msra.mxu0 0.0
    %503 = vmatprep.subr.mxu0 0.0
    %504 = vmatpush1.msra.mxu0 0.0
    %505 = vmatprep.subr.mxu0 0.0
    %506 = vmatpush1.msra.mxu0 0.0
    %507 = vmatprep.mubr.f32.mxu0 0.0
    %508 = vmatmul.mubr.f32.gmra.mrb[0].mxu0 %v441
    %v509 = vpop.f32.mrb[0].mxu0
    %v510 = vadd.f32 %v437, %v509
    %v511 = vpop.f32.mrb[0].mxu0
    %512 = vdwg.mxu0
    %v513 = vrot.slane %v428, 6
    %vm515 = vcmask 1041408
    %v516 = vsel %vm515, %v306, %v513
    %518 = vrot.lane.b32.xlu0 %v516, 96
    %v519 = vpop.permute.xlu0 %518
    %v521 = vsel %vm75, %v519, 0.0
    %v523 = vrot.slane %v510, 4
    %vm525 = vcmask 1043456
    %v526 = vsel %vm525, %v521, %v523
    %vm527 = vcmask 1045504
    %v528 = vsel %vm527, %v526, 0.0
    %529 = vst [vmem:[%s4] sm:$0xff] %v528
    // Predicated region
    $region30: #{gru_pipeline.1} parent=1 // pred_check
      _
    $region31: #{gru_pipeline.1} parent=1 // pred_check_branch
      %531 = sbr.rel (0) target = $region33
    $region32: #{gru_pipeline.1} parent=1 // pred_region
      _
    $region33: #{gru_pipeline.1} parent=1 // pred_fallthru
      _
    // Predicated region
    $region34: #{gru_pipeline.1} parent=1 // pred_check
      _
    $region35: #{gru_pipeline.1} parent=1 // pred_check_branch
      %533 = sbr.rel (0) target = $region37
    $region36: #{gru_pipeline.1} parent=1 // pred_region
      _
    $region37: #{gru_pipeline.1} parent=1 // pred_fallthru
      _
    %534 = vsyncpa [#allocation3], 1
    %535 = vsyncpa [#allocation7], 1
    %536 = vsyncpa [#allocation4], 1

</llo_original>
